<compile_context>
chip_gen: v7x
topology: tpu7x:2x2x1
jax: 0.10.0
libtpu: 0.0.40
codegen_flags: <defaults>
</compile_context>

<pallas_src>
import functools

import jax
import jax.numpy as jnp
from jax.experimental import pallas as pl
from jax.experimental.pallas import tpu as pltpu


def _round_up(x, m):
    return ((x + m - 1) // m) * m


# ---------------------------------------------------------------------------
# Fused kernel:
#   grid = (token tiles, intermediate tiles)
#   k == 0        : DMA row-gather of this tile's embeddings (table or image
#                   rows, selected per token) into VMEM, RMSNorm -> xn scratch.
#   every k       : fused gate|up matmul tile + SwiGLU + down-proj accumulate.
#   k == last     : residual add, write output tile.
# ---------------------------------------------------------------------------
def _fused_embed_block_kernel(
        ids_ref, img_idx_ref, msk_ref,          # scalar prefetch (SMEM)
        table_hbm, img_hbm,                     # HBM refs (manual DMA gather)
        gamma_ref, wgu_ref, wd_ref,             # auto-pipelined VMEM tiles
        out_ref,                                # output tile
        x_ref, xn_ref, acc_ref, gsem,           # scratch
        *, tm, eps):
    i = pl.program_id(0)
    k = pl.program_id(1)
    tin = wd_ref.shape[0]

    @pl.when(k == 0)
    def _gather_and_norm():
        base = i * tm

        # --- manual DMA gather: embed_tokens(input_ids) with image-token rows
        # replaced, in order, by image_embeds rows ---
        @pl.loop(0, tm)
        def _(r):
            tok = ids_ref[base + r]

            @pl.when(msk_ref[base + r] == 0)
            def _():
                pltpu.make_async_copy(
                    table_hbm.at[tok], x_ref.at[r], gsem.at[0]).start()

            @pl.when(msk_ref[base + r] != 0)
            def _():
                pltpu.make_async_copy(
                    img_hbm.at[img_idx_ref[base + r]], x_ref.at[r],
                    gsem.at[0]).start()

        # All row copies signal the same byte-counted DMA semaphore; one
        # aggregate wait covers the full (tm, H) staging buffer.
        pltpu.make_async_copy(
            table_hbm.at[pl.ds(0, tm)], x_ref, gsem.at[0]).wait()

        # --- RMSNorm in f32, stored once in the weight dtype ---
        x = x_ref[...].astype(jnp.float32)
        var = jnp.mean(x * x, axis=-1, keepdims=True)
        xn = x * jax.lax.rsqrt(var + eps) * gamma_ref[...].astype(jnp.float32)
        xn_ref[...] = xn.astype(xn_ref.dtype)
        acc_ref[...] = jnp.zeros_like(acc_ref)

    # --- fused gate|up: one weight stream / one MXU matmul per k-tile ---
    xn = xn_ref[...]
    gu = jnp.dot(xn, wgu_ref[...], preferred_element_type=jnp.float32)
    gate = gu[:, :tin]
    up = gu[:, tin:]
    h = gate * jax.lax.logistic(gate) * up                      # SwiGLU
    acc_ref[...] += jnp.dot(h.astype(wd_ref.dtype), wd_ref[...],
                            preferred_element_type=jnp.float32)

    @pl.when(k == pl.num_programs(1) - 1)
    def _finalize():
        out_ref[...] = (x_ref[...].astype(jnp.float32)
                        + acc_ref[...]).astype(out_ref.dtype)


def hunyuan_fused_forward(input_ids, embed_table, image_rows, image_token_id,
                          gamma, w_gu, w_down, *, tm=256, tin=512, eps=1e-6):
    """inputs_embeds = merge(embed_tokens(input_ids), image_rows) followed by a
    representative HunYuan block (RMSNorm + SwiGLU MLP + residual)."""
    S = input_ids.shape[0]
    V, H = embed_table.shape
    NI = image_rows.shape[0]
    I = w_down.shape[0]
    assert w_gu.shape == (H, 2 * I)

    tin = min(tin, I)
    assert I % tin == 0, "intermediate size must be divisible by the I-tile"
    kt = I // tin

    # decode / short-sequence path: shrink the token tile instead of padding a
    # handful of tokens up to the full prefill tile.
    tm = min(tm, _round_up(max(S, 8), 8))
    assert tm <= V
    Sp = _round_up(S, tm)
    pad = Sp - S

    # NOTE: clip silently reuses row 0 before the first image token and the
    # last image row on a count mismatch; PyTorch merge_multimodal_embeddings
    # would raise instead (inputs are assumed pre-validated by the processor).
    mask = (input_ids == image_token_id).astype(jnp.int32)
    img_idx = jnp.clip(jnp.cumsum(mask) - 1, 0, NI - 1).astype(jnp.int32)
    ids = jnp.clip(input_ids.astype(jnp.int32), 0, V - 1)
    if pad:
        ids = jnp.pad(ids, (0, pad))          # padded rows gather table row 0
        mask = jnp.pad(mask, (0, pad))
        img_idx = jnp.pad(img_idx, (0, pad))

    # Explicit VMEM budget: double-buffered weight tiles + output + scratch.
    wb = w_gu.dtype.itemsize
    xb = embed_table.dtype.itemsize
    vmem_bytes = (2 * H * 2 * tin * wb        # w_gu (double-buffered)
                  + 2 * tin * H * wb          # w_down (double-buffered)
                  + 2 * tm * H * xb           # output tile
                  + 2 * H * xb                # gamma
                  + tm * H * xb               # gathered x (residual)
                  + tm * H * wb               # xn scratch (weight dtype)
                  + tm * H * 4)               # f32 accumulator
    vmem_limit = max(int(vmem_bytes * 1.4) + (1 << 20), 32 << 20)

    kernel = functools.partial(_fused_embed_block_kernel, tm=tm, eps=eps)

    out = pl.pallas_call(
        kernel,
        out_shape=jax.ShapeDtypeStruct((Sp, H), embed_table.dtype),
        grid_spec=pltpu.PrefetchScalarGridSpec(
            num_scalar_prefetch=3,
            grid=(Sp // tm, kt),
            in_specs=[
                pl.BlockSpec(memory_space=pl.ANY),    # embed table (HBM)
                pl.BlockSpec(memory_space=pl.ANY),    # image rows (HBM)
                pl.BlockSpec((1, H), lambda i, k, ids, idx, msk: (0, 0)),
                pl.BlockSpec((H, 2 * tin), lambda i, k, ids, idx, msk: (0, k)),
                pl.BlockSpec((tin, H), lambda i, k, ids, idx, msk: (k, 0)),
            ],
            out_specs=pl.BlockSpec((tm, H), lambda i, k, ids, idx, msk: (i, 0)),
            scratch_shapes=[
                pltpu.VMEM((tm, H), embed_table.dtype),  # gathered x / residual
                pltpu.VMEM((tm, H), w_gu.dtype),          # RMSNorm output
                pltpu.VMEM((tm, H), jnp.float32),         # down-proj accumulator
                pltpu.SemaphoreType.DMA((1,)),            # gather semaphore
            ],
        ),
        compiler_params=pltpu.CompilerParams(
            dimension_semantics=("parallel", "arbitrary"),
            vmem_limit_bytes=vmem_limit),
    )(ids, img_idx, mask, embed_table, image_rows, gamma, w_gu, w_down)

    return out[:S] if pad else out


# ---------------------------------------------------------------------------
# Model wrapper (mirrors HunyuanVideoModel.forward)
# ---------------------------------------------------------------------------
class HunyuanVideoModelPallas:
    def __init__(self, key, vocab_size, hidden_size, intermediate_size,
                 image_token_id, dtype=jnp.float32, rms_eps=1e-6,
                 tile_tokens=256, tile_inter=512):
        # TODO(synk): rms_eps should come from the HunYuan config (often 1e-5).
        k = jax.random.split(key, 4)
        self.image_token_id = image_token_id
        self.rms_eps = rms_eps
        self.tile_tokens = tile_tokens          # 512 on v6e, 256 on v5e/v7x
        self.tile_inter = min(tile_inter, intermediate_size)
        assert intermediate_size % self.tile_inter == 0

        self.embed_tokens = (jax.random.normal(k[0], (vocab_size, hidden_size),
                                               dtype) * 0.02)
        self.rms_gamma = jnp.ones((1, hidden_size), dtype)
        self.w_gate = (jax.random.normal(k[1], (hidden_size, intermediate_size),
                                         dtype) * 0.02)
        self.w_up = (jax.random.normal(k[2], (hidden_size, intermediate_size),
                                       dtype) * 0.02)
        self.w_down = (jax.random.normal(k[3], (intermediate_size, hidden_size),
                                         dtype) * 0.02)

        # Hoisted (weight-load time) gate|up packing: block k of w_gu is
        # [gate[:, k*tin:(k+1)*tin] | up[:, k*tin:(k+1)*tin]].
        kt = intermediate_size // self.tile_inter
        self.w_gu = jnp.concatenate(
            [self.w_gate.reshape(hidden_size, kt, 1, self.tile_inter),
             self.w_up.reshape(hidden_size, kt, 1, self.tile_inter)],
            axis=2).reshape(hidden_size, 2 * intermediate_size)

    def _vision_rows(self, image_embeds):
        # _parse_and_validate_image_input / _process_image_input: image_embeds
        # pass straight through (cast to model dtype, flatten_bn).
        if image_embeds is None:
            # NOTE: image placeholders (if any) silently get a zero row here.
            return jnp.zeros((1, self.embed_tokens.shape[1]),
                             self.embed_tokens.dtype)
        vis = image_embeds.astype(self.embed_tokens.dtype)
        if vis.ndim == 3:                       # flatten_bn
            vis = vis.reshape(-1, vis.shape[-1])
        return vis

    def get_input_embeddings(self, input_ids, image_embeds=None):
        # Plain-JAX helper kept for module parity; the fused kernel performs
        # this gather/merge internally on the hot path.
        vis = self._vision_rows(image_embeds)
        emb = self.embed_tokens[input_ids]
        mask = input_ids == self.image_token_id
        idx = jnp.clip(jnp.cumsum(mask.astype(jnp.int32)) - 1, 0,
                       vis.shape[0] - 1)
        return jnp.where(mask[:, None], vis[idx], emb)

    def forward(self, input_ids, positions, image_embeds=None,
                image_grid_thw=None):
        del positions, image_grid_thw   # see TODO at top of file
        vis = self._vision_rows(image_embeds)
        return hunyuan_fused_forward(
            input_ids, self.embed_tokens, vis, self.image_token_id,
            self.rms_gamma, self.w_gu, self.w_down,
            tm=self.tile_tokens, tin=self.tile_inter, eps=self.rms_eps)


# ---------------------------------------------------------------------------
# Pure-JAX reference (correctness check only)
# ---------------------------------------------------------------------------
def _reference(model, input_ids, image_embeds):
    emb = model.get_input_embeddings(input_ids, image_embeds)
    x = emb.astype(jnp.float32)
    xn = x * jax.lax.rsqrt(jnp.mean(x * x, -1, keepdims=True) + model.rms_eps)
    xn = xn * model.rms_gamma.astype(jnp.float32)
    g = xn @ model.w_gate.astype(jnp.float32)
    u = xn @ model.w_up.astype(jnp.float32)
    y = (g * jax.nn.sigmoid(g) * u) @ model.w_down.astype(jnp.float32)
    return x + y


if __name__ == "__main__":
    key = jax.random.PRNGKey(0)
    k_model, k_img, k_ids = jax.random.split(key, 3)

    VOCAB, HIDDEN, INTER = 256, 128, 256
    SEQ, NUM_IMG_TOK = 16, 4
    IMAGE_TOKEN_ID = VOCAB - 1

    model = HunyuanVideoModelPallas(k_model, VOCAB, HIDDEN, INTER,
                                    IMAGE_TOKEN_ID)

    # input_ids with exactly NUM_IMG_TOK image placeholders
    base_ids = jax.random.randint(k_ids, (SEQ,), 0, VOCAB - 1, dtype=jnp.int32)
    img_positions = jnp.array([3, 4, 5, 6], dtype=jnp.int32)
    input_ids = base_ids.at[img_positions].set(IMAGE_TOKEN_ID)
    positions = jnp.arange(SEQ, dtype=jnp.int32)

    # one image, 4 feature tokens (num_images, num_image_token, hidden)
    image_embeds = jax.random.normal(k_img, (1, NUM_IMG_TOK, HIDDEN),
                                     jnp.float32)
    image_grid_thw = jnp.array([[1, 2, 2]], dtype=jnp.int32)

    out = model.forward(input_ids, positions, image_embeds=image_embeds,
                        image_grid_thw=image_grid_thw)
    out = jax.block_until_ready(out)

    ref = _reference(model, input_ids, image_embeds)
    assert out.shape == (SEQ, HIDDEN)
    err = float(jnp.max(jnp.abs(out.astype(jnp.float32) - ref)))
    assert jnp.allclose(out.astype(jnp.float32), ref, atol=2e-3, rtol=2e-3), err

    print("KERNEL_OK")
</pallas_src>

<mosaic_0001>
module attributes {stable_mosaic.version = 11 : i64} {
  func.func @_fused_embed_block_kernel(%arg0: i32, %arg1: i32, %arg2: memref<16xi32, #tpu.memory_space<smem>>, %arg3: memref<16xi32, #tpu.memory_space<smem>>, %arg4: memref<16xi32, #tpu.memory_space<smem>>, %arg5: memref<256x128xf32, #tpu.memory_space<any>>, %arg6: memref<4x128xf32, #tpu.memory_space<any>>, %arg7: memref<1x128xf32, #tpu.memory_space<vmem>>, %arg8: memref<128x512xf32, #tpu.memory_space<vmem>>, %arg9: memref<256x128xf32, #tpu.memory_space<vmem>>, %arg10: memref<16x128xf32, #tpu.memory_space<vmem>>, %arg11: memref<16x128xf32, #tpu.memory_space<vmem>>, %arg12: memref<16x128xf32, #tpu.memory_space<vmem>>, %arg13: memref<16x128xf32, #tpu.memory_space<vmem>>, %arg14: memref<1x!tpu.dma_semaphore, #tpu.memory_space<semaphore_mem>>) attributes {dimension_semantics = [#tpu.dimension_semantics<parallel>, #tpu.dimension_semantics<arbitrary>], iteration_bounds = array<i64: 1, 1>, scalar_prefetch = 3 : i64, scratch_operands = 4 : i64, tpu.core_type = #tpu.core_type<tc>, window_params = [{}, {}, {pipeline_mode = #tpu.pipeline_mode<synchronous>, transform_indices = @transform_2, window_bounds = array<i64: 1, 128>}, {transform_indices = @transform_3, window_bounds = array<i64: 128, 512>}, {transform_indices = @transform_4, window_bounds = array<i64: 256, 128>}, {transform_indices = @transform_5, window_bounds = array<i64: 16, 128>}]} {
    %c0_i32 = arith.constant 0 : i32
    %0 = arith.cmpi eq, %arg1, %c0_i32 : i32
    %1 = arith.extui %0 : i1 to i32
    %c0_i32_0 = arith.constant 0 : i32
    %2 = arith.cmpi ne, %1, %c0_i32_0 : i32
    scf.if %2 {
      %c16_i32 = arith.constant 16 : i32
      %23 = arith.muli %arg0, %c16_i32 : i32
      %c0_i32_14 = arith.constant 0 : i32
      %c16_i32_15 = arith.constant 16 : i32
      %24 = arith.addi %c0_i32_14, %c16_i32_15 : i32
      %c1_i32 = arith.constant 1 : i32
      scf.for %arg15 = %c0_i32_14 to %24 step %c1_i32  : i32 {
        %c1_i32_32 = arith.constant 1 : i32
        %45 = arith.muli %arg15, %c1_i32_32 : i32
        %c0_i32_33 = arith.constant 0 : i32
        %46 = arith.addi %c0_i32_33, %45 : i32
        %47 = arith.addi %23, %46 : i32
        %48 = arith.index_cast %47 : i32 to index
        %49 = memref.load %arg2[%48] : memref<16xi32, #tpu.memory_space<smem>>
        %50 = arith.addi %23, %46 : i32
        %51 = arith.index_cast %50 : i32 to index
        %52 = memref.load %arg4[%51] : memref<16xi32, #tpu.memory_space<smem>>
        %c0_i32_34 = arith.constant 0 : i32
        %53 = arith.cmpi eq, %52, %c0_i32_34 : i32
        %54 = arith.extui %53 : i1 to i32
        %c0_i32_35 = arith.constant 0 : i32
        %55 = arith.cmpi ne, %54, %c0_i32_35 : i32
        scf.if %55 {
          %c0_i32_38 = arith.constant 0 : i32
          %c0_i32_39 = arith.constant 0 : i32
          %62 = tpu.memref_slice %arg5[%49, %c0_i32_39] : memref<256x128xf32, #tpu.memory_space<any>> -> memref<1x128xf32, #tpu.memory_space<any>>
          %63 = tpu.memref_squeeze %62 : memref<1x128xf32, #tpu.memory_space<any>> -> memref<128xf32, #tpu.memory_space<any>>
          %c0_i32_40 = arith.constant 0 : i32
          %64 = tpu.memref_slice %arg11[%46, %c0_i32_40] : memref<16x128xf32, #tpu.memory_space<vmem>> -> memref<1x128xf32, #tpu.memory_space<vmem>>
          %65 = tpu.memref_squeeze %64 : memref<1x128xf32, #tpu.memory_space<vmem>> -> memref<128xf32, #tpu.memory_space<vmem>>
          %66 = tpu.memref_slice %arg14[%c0_i32_38] : memref<1x!tpu.dma_semaphore, #tpu.memory_space<semaphore_mem>> -> memref<1x!tpu.dma_semaphore, #tpu.memory_space<semaphore_mem>>
          %67 = tpu.memref_squeeze %66 : memref<1x!tpu.dma_semaphore, #tpu.memory_space<semaphore_mem>> -> memref<!tpu.dma_semaphore, #tpu.memory_space<semaphore_mem>>
          tpu.enqueue_dma source(%63 : memref<128xf32, #tpu.memory_space<any>>) target(%65 : memref<128xf32, #tpu.memory_space<vmem>>) target_semaphore(%67 : memref<!tpu.dma_semaphore, #tpu.memory_space<semaphore_mem>>)
        } else {
        }
        %56 = arith.addi %23, %46 : i32
        %57 = arith.index_cast %56 : i32 to index
        %58 = memref.load %arg4[%57] : memref<16xi32, #tpu.memory_space<smem>>
        %c0_i32_36 = arith.constant 0 : i32
        %59 = arith.cmpi ne, %58, %c0_i32_36 : i32
        %60 = arith.extui %59 : i1 to i32
        %c0_i32_37 = arith.constant 0 : i32
        %61 = arith.cmpi ne, %60, %c0_i32_37 : i32
        scf.if %61 {
          %62 = arith.addi %23, %46 : i32
          %63 = arith.index_cast %62 : i32 to index
          %64 = memref.load %arg3[%63] : memref<16xi32, #tpu.memory_space<smem>>
          %c0_i32_38 = arith.constant 0 : i32
          %c0_i32_39 = arith.constant 0 : i32
          %65 = tpu.memref_slice %arg6[%64, %c0_i32_39] : memref<4x128xf32, #tpu.memory_space<any>> -> memref<1x128xf32, #tpu.memory_space<any>>
          %66 = tpu.memref_squeeze %65 : memref<1x128xf32, #tpu.memory_space<any>> -> memref<128xf32, #tpu.memory_space<any>>
          %c0_i32_40 = arith.constant 0 : i32
          %67 = tpu.memref_slice %arg11[%46, %c0_i32_40] : memref<16x128xf32, #tpu.memory_space<vmem>> -> memref<1x128xf32, #tpu.memory_space<vmem>>
          %68 = tpu.memref_squeeze %67 : memref<1x128xf32, #tpu.memory_space<vmem>> -> memref<128xf32, #tpu.memory_space<vmem>>
          %69 = tpu.memref_slice %arg14[%c0_i32_38] : memref<1x!tpu.dma_semaphore, #tpu.memory_space<semaphore_mem>> -> memref<1x!tpu.dma_semaphore, #tpu.memory_space<semaphore_mem>>
          %70 = tpu.memref_squeeze %69 : memref<1x!tpu.dma_semaphore, #tpu.memory_space<semaphore_mem>> -> memref<!tpu.dma_semaphore, #tpu.memory_space<semaphore_mem>>
          tpu.enqueue_dma source(%66 : memref<128xf32, #tpu.memory_space<any>>) target(%68 : memref<128xf32, #tpu.memory_space<vmem>>) target_semaphore(%70 : memref<!tpu.dma_semaphore, #tpu.memory_space<semaphore_mem>>)
        } else {
        }
      }
      %c16_i32_16 = arith.constant 16 : i32
      %c0_i32_17 = arith.constant 0 : i32
      %c0_i32_18 = arith.constant 0 : i32
      %c0_i32_19 = arith.constant 0 : i32
      %25 = tpu.memref_slice %arg5[%c0_i32_18, %c0_i32_19] : memref<256x128xf32, #tpu.memory_space<any>> -> memref<16x128xf32, #tpu.memory_space<any>>
      %26 = tpu.memref_slice %arg14[%c0_i32_17] : memref<1x!tpu.dma_semaphore, #tpu.memory_space<semaphore_mem>> -> memref<1x!tpu.dma_semaphore, #tpu.memory_space<semaphore_mem>>
      %27 = tpu.memref_squeeze %26 : memref<1x!tpu.dma_semaphore, #tpu.memory_space<semaphore_mem>> -> memref<!tpu.dma_semaphore, #tpu.memory_space<semaphore_mem>>
      tpu.wait_dma2 semaphore(%27 : memref<!tpu.dma_semaphore, #tpu.memory_space<semaphore_mem>>) src(%25 : memref<16x128xf32, #tpu.memory_space<any>>) dst(%arg11 : memref<16x128xf32, #tpu.memory_space<vmem>>)
      %c0_20 = arith.constant 0 : index
      %c0_21 = arith.constant 0 : index
      %28 = vector.load %arg11[%c0_20, %c0_21] : memref<16x128xf32, #tpu.memory_space<vmem>>, vector<16x128xf32>
      %29 = arith.mulf %28, %28 : vector<16x128xf32>
      %cst_22 = arith.constant dense<0.000000e+00> : vector<16xf32>
      %30 = vector.multi_reduction <add>, %29, %cst_22 [1] : vector<16x128xf32> to vector<16xf32>
      %31 = vector.shape_cast %30 : vector<16xf32> to vector<16x1xf32>
      %cst_23 = arith.constant 1.280000e+02 : f32
      %32 = vector.broadcast %cst_23 : f32 to vector<16x1xf32>
      %33 = arith.divf %31, %32 : vector<16x1xf32>
      %cst_24 = arith.constant 9.99999997E-7 : f32
      %34 = vector.broadcast %cst_24 : f32 to vector<16x1xf32>
      %35 = arith.addf %33, %34 : vector<16x1xf32>
      %36 = math.rsqrt %35 : vector<16x1xf32>
      %37 = vector.broadcast %36 : vector<16x1xf32> to vector<16x128xf32>
      %38 = arith.mulf %28, %37 : vector<16x128xf32>
      %c0_25 = arith.constant 0 : index
      %c0_26 = arith.constant 0 : index
      %39 = vector.load %arg7[%c0_25, %c0_26] : memref<1x128xf32, #tpu.memory_space<vmem>>, vector<1x128xf32>
      %40 = vector.broadcast %39 : vector<1x128xf32> to vector<16x128xf32>
      %41 = arith.mulf %38, %40 : vector<16x128xf32>
      %c0_27 = arith.constant 0 : index
      %c0_28 = arith.constant 0 : index
      %42 = vector.load %arg12[%c0_27, %c0_28] : memref<16x128xf32, #tpu.memory_space<vmem>>, vector<16x128xf32>
      tpu.vector_store %arg12[%c0_27, %c0_28], %41 {strides = array<i32>} : memref<16x128xf32, #tpu.memory_space<vmem>>, vector<16x128xf32>,
      %cst_29 = arith.constant 0.000000e+00 : f32
      %43 = vector.broadcast %cst_29 : f32 to vector<16x128xf32>
      %c0_30 = arith.constant 0 : index
      %c0_31 = arith.constant 0 : index
      %44 = vector.load %arg13[%c0_30, %c0_31] : memref<16x128xf32, #tpu.memory_space<vmem>>, vector<16x128xf32>
      tpu.vector_store %arg13[%c0_30, %c0_31], %43 {strides = array<i32>} : memref<16x128xf32, #tpu.memory_space<vmem>>, vector<16x128xf32>,
    } else {
    }
    %c0 = arith.constant 0 : index
    %c0_1 = arith.constant 0 : index
    %3 = vector.load %arg12[%c0, %c0_1] : memref<16x128xf32, #tpu.memory_space<vmem>>, vector<16x128xf32>
    %c0_2 = arith.constant 0 : index
    %c0_3 = arith.constant 0 : index
    %4 = vector.load %arg8[%c0_2, %c0_3] : memref<128x512xf32, #tpu.memory_space<vmem>>, vector<128x512xf32>
    %cst = arith.constant dense<0.000000e+00> : vector<16x512xf32>
    %5 = tpu.matmul %3, %4, %cst {dimension_numbers = #tpu.dot_dimension_numbers<[1], [0], [0], [1], [0, 0, 1, 1], [], []>} : vector<16x128xf32>, vector<128x512xf32>, vector<16x512xf32> -> vector<16x512xf32>
    %6 = vector.extract_strided_slice %5 {offsets = [0, 0], sizes = [16, 256], strides = [1, 1]} : vector<16x512xf32> to vector<16x256xf32>
    %7 = vector.extract_strided_slice %5 {offsets = [0, 256], sizes = [16, 256], strides = [1, 1]} : vector<16x512xf32> to vector<16x256xf32>
    %8 = arith.negf %6 : vector<16x256xf32>
    %9 = math.exp %8 : vector<16x256xf32>
    %cst_4 = arith.constant 1.000000e+00 : f32
    %10 = vector.broadcast %cst_4 : f32 to vector<16x256xf32>
    %11 = arith.addf %10, %9 : vector<16x256xf32>
    %12 = arith.divf %10, %11 : vector<16x256xf32>
    %13 = arith.mulf %6, %12 : vector<16x256xf32>
    %14 = arith.mulf %13, %7 : vector<16x256xf32>
    %c0_5 = arith.constant 0 : index
    %c0_6 = arith.constant 0 : index
    %15 = vector.load %arg13[%c0_5, %c0_6] : memref<16x128xf32, #tpu.memory_space<vmem>>, vector<16x128xf32>
    %c0_7 = arith.constant 0 : index
    %c0_8 = arith.constant 0 : index
    %16 = vector.load %arg9[%c0_7, %c0_8] : memref<256x128xf32, #tpu.memory_space<vmem>>, vector<256x128xf32>
    %cst_9 = arith.constant dense<0.000000e+00> : vector<16x128xf32>
    %17 = tpu.matmul %14, %16, %cst_9 {dimension_numbers = #tpu.dot_dimension_numbers<[1], [0], [0], [1], [0, 0, 1, 1], [], []>} : vector<16x256xf32>, vector<256x128xf32>, vector<16x128xf32> -> vector<16x128xf32>
    %18 = arith.addf %15, %17 : vector<16x128xf32>
    %c0_10 = arith.constant 0 : index
    %c0_11 = arith.constant 0 : index
    %19 = vector.load %arg13[%c0_10, %c0_11] : memref<16x128xf32, #tpu.memory_space<vmem>>, vector<16x128xf32>
    tpu.vector_store %arg13[%c0_10, %c0_11], %18 {strides = array<i32>} : memref<16x128xf32, #tpu.memory_space<vmem>>, vector<16x128xf32>,
    %c0_i32_12 = arith.constant 0 : i32
    %20 = arith.cmpi eq, %arg1, %c0_i32_12 : i32
    %21 = arith.extui %20 : i1 to i32
    %c0_i32_13 = arith.constant 0 : i32
    %22 = arith.cmpi ne, %21, %c0_i32_13 : i32
    scf.if %22 {
      %c0_14 = arith.constant 0 : index
      %c0_15 = arith.constant 0 : index
      %23 = vector.load %arg11[%c0_14, %c0_15] : memref<16x128xf32, #tpu.memory_space<vmem>>, vector<16x128xf32>
      %c0_16 = arith.constant 0 : index
      %c0_17 = arith.constant 0 : index
      %24 = vector.load %arg13[%c0_16, %c0_17] : memref<16x128xf32, #tpu.memory_space<vmem>>, vector<16x128xf32>
      %25 = arith.addf %23, %24 : vector<16x128xf32>
      %c0_18 = arith.constant 0 : index
      %c0_19 = arith.constant 0 : index
      %26 = vector.load %arg10[%c0_18, %c0_19] : memref<16x128xf32, #tpu.memory_space<vmem>>, vector<16x128xf32>
      tpu.vector_store %arg10[%c0_18, %c0_19], %25 {strides = array<i32>} : memref<16x128xf32, #tpu.memory_space<vmem>>, vector<16x128xf32>,
    } else {
    }
    return
  }
  func.func @transform_2(%arg0: i32, %arg1: i32, %arg2: memref<16xi32, #tpu.memory_space<smem>>, %arg3: memref<16xi32, #tpu.memory_space<smem>>, %arg4: memref<16xi32, #tpu.memory_space<smem>>) -> (i32, i32) {
    %c0_i32 = arith.constant 0 : i32
    %c0_i32_0 = arith.constant 0 : i32
    %c0_i32_1 = arith.constant 0 : i32
    return %c0_i32, %c0_i32_0 : i32, i32
  }
  func.func @transform_3(%arg0: i32, %arg1: i32, %arg2: memref<16xi32, #tpu.memory_space<smem>>, %arg3: memref<16xi32, #tpu.memory_space<smem>>, %arg4: memref<16xi32, #tpu.memory_space<smem>>) -> (i32, i32) {
    %c0_i32 = arith.constant 0 : i32
    %c0_i32_0 = arith.constant 0 : i32
    return %c0_i32, %arg1 : i32, i32
  }
  func.func @transform_4(%arg0: i32, %arg1: i32, %arg2: memref<16xi32, #tpu.memory_space<smem>>, %arg3: memref<16xi32, #tpu.memory_space<smem>>, %arg4: memref<16xi32, #tpu.memory_space<smem>>) -> (i32, i32) {
    %c0_i32 = arith.constant 0 : i32
    %c0_i32_0 = arith.constant 0 : i32
    return %arg1, %c0_i32 : i32, i32
  }
  func.func @transform_5(%arg0: i32, %arg1: i32, %arg2: memref<16xi32, #tpu.memory_space<smem>>, %arg3: memref<16xi32, #tpu.memory_space<smem>>, %arg4: memref<16xi32, #tpu.memory_space<smem>>) -> (i32, i32) {
    %c0_i32 = arith.constant 0 : i32
    %c0_i32_0 = arith.constant 0 : i32
    return %arg0, %c0_i32 : i32, i32
  }
}

</mosaic_0001>

<llo_original>
// kernel: tpu_custom_call.1
$region0: #{tpu_custom_call.1}
  #allocation0 [shape = 'u32[]', space=smem, size = 0x4, offset = 0x4, fixed_abs, tag = 'smem constant byte address 0x4 - core index']
  #allocation1 [shape = 'u32[144,128]{1,0:T(1,128)}', space=vmem, size = 0x12000, scoped, tag = 'internal scratch']
  #allocation2 [shape = 'f32[16,128]{1,0:T(8,128)}', space=vmem, size = 0x2000, scoped, tag = 'scratch operand']
  #allocation3 [shape = 'f32[16,128]{1,0:T(8,128)}', space=vmem, size = 0x2000, scoped, tag = 'scratch operand']
  #allocation4 [shape = 'f32[16,128]{1,0:T(8,128)}', space=vmem, size = 0x2000, scoped, tag = 'scratch operand']
  #allocation5 [shape = 's32[1]{0}', space=sflag, size = 0x4, scoped, tag = 'scratch operand']
  #allocation6 [shape = 's32[1]{0}', space=sflag, size = 0x4, scoped, tag = 'scoped memory for tpu_custom_call.1']
  #allocation7 [shape = 'u8[512]{0}', space=smem, size = 0x200, scoped, tag = 'prefetched SMEM operand 0']
  #allocation8 [shape = 'u8[512]{0}', space=smem, size = 0x200, scoped, tag = 'prefetched SMEM operand 1']
  #allocation9 [shape = 'u8[512]{0}', space=smem, size = 0x200, scoped, tag = 'prefetched SMEM operand 2']
  #allocation16 [shape = 's32[]', space=sflag, size = 0x4, offset = 0, fixed_abs, tag = 'sflag constant byte address 0x0 - dummy sync flag']
  #allocation17 [shape = 's32[]', space=sflag, size = 0x4, offset = 0, fixed_abs, tag = 'sflag constant byte address 0x0 - dummy sync flag']
  #allocation18 [shape = 'u32[]', space=smem, size = 0x4, offset = 0x44, fixed_abs, tag = 'smem constant byte address 0x44 - assertion arg 0']
  #allocation19 [shape = 'u32[]', space=smem, size = 0x4, offset = 0x48, fixed_abs, tag = 'smem constant byte address 0x48 - assertion arg 1']
  #allocation20 [shape = 's32[]', space=sflag, size = 0x4, offset = 0, fixed_abs, tag = 'sflag constant byte address 0x0 - dummy sync flag']
  %s0 = inlined_call_operand.hbm [shape: s32[16], index: 0, kind: input, shape index: {}]
  %s1 = inlined_call_operand.vmem [shape: s32[16], index: 1, kind: input, shape index: {}]
  %s2 = inlined_call_operand.vmem [shape: s32[16], index: 2, kind: input, shape index: {}]
  %s3 = inlined_call_operand.hbm [shape: f32[256,128], index: 3, kind: input, shape index: {}]
  %s4 = inlined_call_operand.vmem [shape: f32[4,128], index: 4, kind: input, shape index: {}]
  %s5 = inlined_call_operand.vmem [shape: f32[1,128], index: 5, kind: input, shape index: {}]
  %s6 = inlined_call_operand.hbm [shape: f32[128,512], index: 6, kind: input, shape index: {}]
  %s7 = inlined_call_operand.hbm [shape: f32[256,128], index: 7, kind: input, shape index: {}]
  %s8 = inlined_call_operand.hbm [shape: f32[16,128], index: 8, kind: output, shape index: {}]
  %s9 = sld [smem:[#allocation0]]
  $region87: #{tpu_custom_call.1} parent=0
    _
  %s11 = ssub.s32 1, %s9
  %s12 = scalar_select 0, %s11, %s9
  %14 = dma.hbm_to_smem %s0, 16, [#allocation7], [#allocation6]
  %s15 = sshll.u32 %s1, 4
  %s16 = int_to_ptr.vmem [resolvable:$true] %s15
  %18 = dma.vmem_to_smem %s16, 16, [#allocation8], [#allocation6]
  %s19 = sshll.u32 %s2, 4
  %s20 = int_to_ptr.vmem [resolvable:$true] %s19
  %22 = dma.vmem_to_smem %s20, 16, [#allocation9], [#allocation6]
  %23 = dma.done [#allocation6], 48
  %24 = sfence
  $region1: #{tpu_custom_call.1} parent=0
    #allocation10 [shape = 'u8[262144]{0}', space=vmem, size = 0x40000, scoped, tag = 'input window, operand 6, single buffered']
    #allocation11 [shape = 's32[1]{0}', space=sflag, size = 0x4, scoped, tag = 'scoped memory for tpu_custom_call.1']
    #allocation12 [shape = 's32[1]{0}', space=sflag, size = 0x4, scoped, tag = 'scoped memory for tpu_custom_call.1']
    #allocation13 [shape = 'u8[131072]{0}', space=vmem, size = 0x20000, scoped, tag = 'input window, operand 7, single buffered']
    #allocation14 [shape = 's32[1]{0}', space=sflag, size = 0x4, scoped, tag = 'scoped memory for tpu_custom_call.1']
    #allocation15 [shape = 'u8[8192]{0}', space=vmem, size = 0x2000, scoped, tag = 'output window, operand 0, single buffered']
    %25 = vsyncpa [#allocation11], 0
    %26 = vsyncpa [#allocation14], 0
    %27 = vsyncpa [#allocation12], 0
    // Predicated region
    $region2: #{tpu_custom_call.1} parent=1 // pred_check
      _
    $region3: #{tpu_custom_call.1} parent=1 // pred_check_branch
      %29 = sbr.rel (0) target = $region5
    $region4: #{tpu_custom_call.1} parent=1 // pred_region
      _
    $region5: #{tpu_custom_call.1} parent=1 // pred_fallthru
      _
    // Predicated region
    $region6: #{tpu_custom_call.1} parent=1 // pred_check
      _
    $region7: #{tpu_custom_call.1} parent=1 // pred_check_branch
      %31 = sbr.rel (0) target = $region9
    $region8: #{tpu_custom_call.1} parent=1 // pred_region
      %s33 = ssub.s32 8192, 8192
      %34 = vsyncadd [#allocation11], %s33
      %s35 = sshll.u32 [#allocation10], 4
      %s36 = int_to_ptr.vmem [resolvable:$true] %s35
      %41 = dma.hbm_to_vmem [thread:$0]  %s6, 8192, %s36, [#allocation11], 512, 512, 32
    $region9: #{tpu_custom_call.1} parent=1 // pred_fallthru
      _
    // Predicated region
    $region10: #{tpu_custom_call.1} parent=1 // pred_check
      _
    $region11: #{tpu_custom_call.1} parent=1 // pred_check_branch
      %43 = sbr.rel (0) target = $region13
    $region12: #{tpu_custom_call.1} parent=1 // pred_region
      %s45 = ssub.s32 4096, 4096
      %46 = vsyncadd [#allocation14], %s45
      %s47 = sshll.u32 [#allocation13], 4
      %s48 = int_to_ptr.vmem [resolvable:$true] %s47
      %53 = dma.hbm_to_vmem [thread:$0]  %s7, 4096, %s48, [#allocation14], 128, 128, 8
    $region13: #{tpu_custom_call.1} parent=1 // pred_fallthru
      _
    // Predicated region
    $region14: #{tpu_custom_call.1} parent=1 // pred_check
      _
    $region15: #{tpu_custom_call.1} parent=1 // pred_check_branch
      %55 = sbr.rel (0) target = $region17
    $region16: #{tpu_custom_call.1} parent=1 // pred_region
      %56 = dma.done [#allocation11], 8192
    $region17: #{tpu_custom_call.1} parent=1 // pred_fallthru
      _
    // Predicated region
    $region18: #{tpu_custom_call.1} parent=1 // pred_check
      _
    $region19: #{tpu_custom_call.1} parent=1 // pred_check_branch
      %58 = sbr.rel (0) target = $region21
    $region20: #{tpu_custom_call.1} parent=1 // pred_region
      %59 = dma.done [#allocation14], 4096
    $region21: #{tpu_custom_call.1} parent=1 // pred_fallthru
      _
    %p60 = scmp.eq.s32.totalorder 0, 0
    // Predicated region
    $region22: #{tpu_custom_call.1} parent=1 // pred_check
      %p61 = pneg %p60
    $region23: #{tpu_custom_call.1} parent=1 // pred_check_branch
      %63 = sbr.rel (%p61) target = $region25
    $region24: #{tpu_custom_call.1} parent=1 // pred_region
      %s64 = smul.u32 0, 16
      loop: start=0, step=1, limit=16
      $region26: #{tpu_custom_call.1} parent=24 // loop_pre_header
        _
      $region27: #{tpu_custom_call.1} parent=24 // loop_header
        %s66 = sphi 0, %s70
        %p67 = scmp.ge.s32.totalorder %s66, 16
      $region28: #{tpu_custom_call.1} parent=24 // loop_header_branch
        %69 = sbr.rel (%p67) target = $region32
      $region29: #{tpu_custom_call.1} parent=24 // loop_body
        %s71 = sadd.s32 %s64, %s66
        %s72 = sld [smem:[#allocation7 + %s71]]
        %s73 = sld [smem:[#allocation9 + %s71]]
        %p74 = scmp.eq.s32.totalorder %s73, 0
        // Predicated region
        $region33: #{tpu_custom_call.1} parent=29 // pred_check
          %p75 = pneg %p74
        $region34: #{tpu_custom_call.1} parent=29 // pred_check_branch
          %77 = sbr.rel (%p75) target = $region36
        $region35: #{tpu_custom_call.1} parent=29 // pred_region
          %s78 = smul.addr %s72, 16
          %s79 = scalar_lea.hbm %s3, %s78
          %s80 = scalar_lea.vmem [#allocation2], %s66
          // Predicated region
          $region37: #{tpu_custom_call.1} parent=35 // pred_check
            _
          $region38: #{tpu_custom_call.1} parent=35 // pred_check_branch
            %82 = sbr.rel target = $region40
          $region39: #{tpu_custom_call.1} parent=35 // pred_region
            %83 = sst [smem:[#allocation18]] [#allocation17]
            %84 = sst [smem:[#allocation19]] [#allocation16]
          $region40: #{tpu_custom_call.1} parent=35 // pred_fallthru
            _
          %86 = shalt.err (0)
          %s88 = sshll.u32 %s80, 4
          %s89 = int_to_ptr.vmem [resolvable:$true] %s88
          %91 = dma.hbm_to_vmem [thread:$0]  %s79, 16, %s89, [#allocation5]
        $region36: #{tpu_custom_call.1} parent=29 // pred_fallthru
          _
        %s92 = sld [smem:[#allocation9 + %s71]]
        %p93 = scmp.ne.s32.totalorder %s92, 0
        // Predicated region
        $region41: #{tpu_custom_call.1} parent=29 // pred_check
          %p94 = pneg %p93
        $region42: #{tpu_custom_call.1} parent=29 // pred_check_branch
          %96 = sbr.rel (%p94) target = $region44
        $region43: #{tpu_custom_call.1} parent=29 // pred_region
          %s97 = sld [smem:[#allocation8 + %s71]]
          %s98 = scalar_lea.vmem %s4, %s97
          %s99 = scalar_lea.vmem [#allocation2], %s66
          %p101 = scmp.lt.u32.totalorder 1, 8
          %p102 = pneg %p101
          // Predicated region
          $region45: #{tpu_custom_call.1} parent=43 // pred_check
            _
          $region46: #{tpu_custom_call.1} parent=43 // pred_check_branch
            %104 = sbr.rel (%p101) target = $region48
          $region47: #{tpu_custom_call.1} parent=43 // pred_region
            %s119 = sand.u32 1, 7
            %p120 = scmp.eq.s32.totalorder %s119, 0
            %p121 = pneg %p120
            // Predicated region
            $region60: #{tpu_custom_call.1} parent=47 // pred_check
              _
            $region61: #{tpu_custom_call.1} parent=47 // pred_check_branch
              %123 = sbr.rel (%p120) target = $region63
            $region62: #{tpu_custom_call.1} parent=47 // pred_region
              %s124 = sand.u32 1, 7
              %s125 = ssub.s32 1, %s124
              %s126 = scalar_lea.vmem %s98, %s125
              %s127 = ssub.s32 1, %s124
              %s128 = scalar_lea.vmem %s99, %s127 [#allocation2]
              %s129 = sshllo.u32 0, %s124
              loop: start=0, step=1, limit=1
              $region64: #{tpu_custom_call.1} parent=62 // loop_pre_header
                _
              $region65: #{tpu_custom_call.1} parent=62 // loop_header
                %s131 = sphi 0, %s135
                %p132 = scmp.ge.s32.totalorder %s131, 1
                %s136 = sphi %s126, %s126
                %s137 = sphi %s128, %s128
              $region66: #{tpu_custom_call.1} parent=62 // loop_header_branch
                %134 = sbr.rel (%p132) target = $region70
              $region67: #{tpu_custom_call.1} parent=62 // loop_body
                %v138 = vld [vmem:[%s136] sm:%s129]
                %139 = vst [vmem:[%s137] sm:%s129] %v138
              $region68: #{tpu_custom_call.1} parent=62 // loop_footer
                %s135 = sadd.s32 1, %s131
              $region69: #{tpu_custom_call.1} parent=62 // loop_footer_branch
                %130 = sbr.rel target = $region65
              $region70: #{tpu_custom_call.1} parent=62 // loop_exit
                _
            $region63: #{tpu_custom_call.1} parent=47 // pred_fallthru
              _
          $region48: #{tpu_custom_call.1} parent=43 // pred_fallthru
            _
          // Predicated region
          $region49: #{tpu_custom_call.1} parent=43 // pred_check
            %p105 = pneg %p101
          $region50: #{tpu_custom_call.1} parent=43 // pred_check_branch
            %107 = sbr.rel (%p105) target = $region52
          $region51: #{tpu_custom_call.1} parent=43 // pred_region
            %s108 = sshllo.u32 0, 1
            loop: start=0, step=1, limit=1
            $region53: #{tpu_custom_call.1} parent=51 // loop_pre_header
              _
            $region54: #{tpu_custom_call.1} parent=51 // loop_header
              %s110 = sphi 0, %s114
              %p111 = scmp.ge.s32.totalorder %s110, 1
              %s115 = sphi %s98, %s98
              %s116 = sphi %s99, %s99
            $region55: #{tpu_custom_call.1} parent=51 // loop_header_branch
              %113 = sbr.rel (%p111) target = $region59
            $region56: #{tpu_custom_call.1} parent=51 // loop_body
              %v117 = vld [vmem:[%s115] sm:%s108]
              %118 = vst [vmem:[%s116] sm:%s108] %v117
            $region57: #{tpu_custom_call.1} parent=51 // loop_footer
              %s114 = sadd.s32 1, %s110
            $region58: #{tpu_custom_call.1} parent=51 // loop_footer_branch
              %109 = sbr.rel target = $region54
            $region59: #{tpu_custom_call.1} parent=51 // loop_exit
              _
          $region52: #{tpu_custom_call.1} parent=43 // pred_fallthru
            _
          // Predicated region
          $region71: #{tpu_custom_call.1} parent=43 // pred_check
            _
          $region72: #{tpu_custom_call.1} parent=43 // pred_check_branch
            %142 = sbr.rel (0) target = $region74
          $region73: #{tpu_custom_call.1} parent=43 // pred_region
            %143 = vsyncadd [#allocation5], 16
          $region74: #{tpu_custom_call.1} parent=43 // pred_fallthru
            _
        $region44: #{tpu_custom_call.1} parent=29 // pred_fallthru
          _
      $region30: #{tpu_custom_call.1} parent=24 // loop_footer
        %s70 = sadd.s32 1, %s66
      $region31: #{tpu_custom_call.1} parent=24 // loop_footer_branch
        %65 = sbr.rel target = $region27
      $region32: #{tpu_custom_call.1} parent=24 // loop_exit
        _
      %s144 = smul.u32 16, 1
      %s145 = sshll.u32 %s144, 4
      %146 = dma.done [#allocation5], %s145
      %v147 = vld [vmem:[#allocation2] sm:$0xff]
      %v148 = vld [vmem:[#allocation2 + $0x8] sm:$0xff]
      %v149 = vmul.f32 %v147, %v147
      %v150 = vmul.f32 %v148, %v148
      %151 = vadd.xlane.f32.xlu0 %v149
      %v152 = vpop.xlane.xlu0 %151
      %153 = vadd.xlane.f32.xlu0 %v150
      %v154 = vpop.xlane.xlu0 %153
      %v155 = vrcp.pop 128.0
      %v156 = vmul.f32 %v152, %v155
      %v157 = vmul.f32 %v154, %v155
      %v158 = vadd.f32 %v156, 1e-06
      %v159 = vadd.f32 %v157, 1e-06
      %v160 = vrsqrt.pop %v158
      %v161 = vrsqrt.pop %v159
      %v162 = vmul.f32 %v147, %v160
      %v163 = vmul.f32 %v148, %v161
      %v164 = vld [vmem:[%s5] sm:$0x1]
      %v166 = vlaneseq
      %v167 = vshrl.u32 %v166, 7
      %v168 = vsub.s32 0, %v167
      %v169 = vrot.slane %v164, %v168
      %v171 = vmul.f32 %v162, %v169
      %v172 = vmul.f32 %v163, %v169
      %173 = vst [vmem:[#allocation3] sm:$0xff] %v171
      %174 = vst [vmem:[#allocation3 + $0x8] sm:$0xff] %v172
      %175 = vst [vmem:[#allocation4] sm:$0xff] 0.0
      %176 = vst [vmem:[#allocation4 + $0x8] sm:$0xff] 0.0
    $region25: #{tpu_custom_call.1} parent=1 // pred_fallthru
      _
    %v177 = vld [vmem:[#allocation3] sm:$0xff]
    %v178 = vld [vmem:[#allocation3 + $0x8] sm:$0xff]
    %v179 = vld [vmem:[#allocation10] sm:$0xff]
    %v180 = vld [vmem:[#allocation10 + $0x8] sm:$0xff]
    %v181 = vld [vmem:[#allocation10 + $0x10] sm:$0xff]
    %v182 = vld [vmem:[#allocation10 + $0x18] sm:$0xff]
    %v183 = vld [vmem:[#allocation10 + $0x20] sm:$0xff]
    %v184 = vld [vmem:[#allocation10 + $0x28] sm:$0xff]
    %v185 = vld [vmem:[#allocation10 + $0x30] sm:$0xff]
    %v186 = vld [vmem:[#allocation10 + $0x38] sm:$0xff]
    %v187 = vld [vmem:[#allocation10 + $0x40] sm:$0xff]
    %v188 = vld [vmem:[#allocation10 + $0x48] sm:$0xff]
    %v189 = vld [vmem:[#allocation10 + $0x50] sm:$0xff]
    %v190 = vld [vmem:[#allocation10 + $0x58] sm:$0xff]
    %v191 = vld [vmem:[#allocation10 + $0x60] sm:$0xff]
    %v192 = vld [vmem:[#allocation10 + $0x68] sm:$0xff]
    %v193 = vld [vmem:[#allocation10 + $0x70] sm:$0xff]
    %v194 = vld [vmem:[#allocation10 + $0x78] sm:$0xff]
    %v195 = vld [vmem:[#allocation10 + $0x80] sm:$0xff]
    %v196 = vld [vmem:[#allocation10 + $0x88] sm:$0xff]
    %v197 = vld [vmem:[#allocation10 + $0x90] sm:$0xff]
    %v198 = vld [vmem:[#allocation10 + $0x98] sm:$0xff]
    %v199 = vld [vmem:[#allocation10 + $0xa0] sm:$0xff]
    %v200 = vld [vmem:[#allocation10 + $0xa8] sm:$0xff]
    %v201 = vld [vmem:[#allocation10 + $0xb0] sm:$0xff]
    %v202 = vld [vmem:[#allocation10 + $0xb8] sm:$0xff]
    %v203 = vld [vmem:[#allocation10 + $0xc0] sm:$0xff]
    %v204 = vld [vmem:[#allocation10 + $0xc8] sm:$0xff]
    %v205 = vld [vmem:[#allocation10 + $0xd0] sm:$0xff]
    %v206 = vld [vmem:[#allocation10 + $0xd8] sm:$0xff]
    %v207 = vld [vmem:[#allocation10 + $0xe0] sm:$0xff]
    %v208 = vld [vmem:[#allocation10 + $0xe8] sm:$0xff]
    %v209 = vld [vmem:[#allocation10 + $0xf0] sm:$0xff]
    %v210 = vld [vmem:[#allocation10 + $0xf8] sm:$0xff]
    %v211 = vld [vmem:[#allocation10 + $0x100] sm:$0xff]
    %v212 = vld [vmem:[#allocation10 + $0x108] sm:$0xff]
    %v213 = vld [vmem:[#allocation10 + $0x110] sm:$0xff]
    %v214 = vld [vmem:[#allocation10 + $0x118] sm:$0xff]
    %v215 = vld [vmem:[#allocation10 + $0x120] sm:$0xff]
    %v216 = vld [vmem:[#allocation10 + $0x128] sm:$0xff]
    %v217 = vld [vmem:[#allocation10 + $0x130] sm:$0xff]
    %v218 = vld [vmem:[#allocation10 + $0x138] sm:$0xff]
    %v219 = vld [vmem:[#allocation10 + $0x140] sm:$0xff]
    %v220 = vld [vmem:[#allocation10 + $0x148] sm:$0xff]
    %v221 = vld [vmem:[#allocation10 + $0x150] sm:$0xff]
    %v222 = vld [vmem:[#allocation10 + $0x158] sm:$0xff]
    %v223 = vld [vmem:[#allocation10 + $0x160] sm:$0xff]
    %v224 = vld [vmem:[#allocation10 + $0x168] sm:$0xff]
    %v225 = vld [vmem:[#allocation10 + $0x170] sm:$0xff]
    %v226 = vld [vmem:[#allocation10 + $0x178] sm:$0xff]
    %v227 = vld [vmem:[#allocation10 + $0x180] sm:$0xff]
    %v228 = vld [vmem:[#allocation10 + $0x188] sm:$0xff]
    %v229 = vld [vmem:[#allocation10 + $0x190] sm:$0xff]
    %v230 = vld [vmem:[#allocation10 + $0x198] sm:$0xff]
    %v231 = vld [vmem:[#allocation10 + $0x1a0] sm:$0xff]
    %v232 = vld [vmem:[#allocation10 + $0x1a8] sm:$0xff]
    %v233 = vld [vmem:[#allocation10 + $0x1b0] sm:$0xff]
    %v234 = vld [vmem:[#allocation10 + $0x1b8] sm:$0xff]
    %v235 = vld [vmem:[#allocation10 + $0x1c0] sm:$0xff]
    %v236 = vld [vmem:[#allocation10 + $0x1c8] sm:$0xff]
    %v237 = vld [vmem:[#allocation10 + $0x1d0] sm:$0xff]
    %v238 = vld [vmem:[#allocation10 + $0x1d8] sm:$0xff]
    %v239 = vld [vmem:[#allocation10 + $0x1e0] sm:$0xff]
    %v240 = vld [vmem:[#allocation10 + $0x1e8] sm:$0xff]
    %v241 = vld [vmem:[#allocation10 + $0x1f0] sm:$0xff]
    %v242 = vld [vmem:[#allocation10 + $0x1f8] sm:$0xff]
    %243 = vmatprep.subr.mxu0 %v180
    %244 = vmatpush1.msra.mxu0 %v179
    %245 = vmatprep.subr.mxu0 %v184
    %246 = vmatpush1.msra.mxu0 %v183
    %247 = vmatprep.subr.mxu0 %v188
    %248 = vmatpush1.msra.mxu0 %v187
    %249 = vmatprep.subr.mxu0 %v192
    %250 = vmatpush1.msra.mxu0 %v191
    %251 = vmatprep.subr.mxu0 %v196
    %252 = vmatpush1.msra.mxu0 %v195
    %253 = vmatprep.subr.mxu0 %v200
    %254 = vmatpush1.msra.mxu0 %v199
    %255 = vmatprep.subr.mxu0 %v204
    %256 = vmatpush1.msra.mxu0 %v203
    %257 = vmatprep.subr.mxu0 %v208
    %258 = vmatpush1.msra.mxu0 %v207
    %259 = vmatprep.subr.mxu0 %v212
    %260 = vmatpush1.msra.mxu0 %v211
    %261 = vmatprep.subr.mxu0 %v216
    %262 = vmatpush1.msra.mxu0 %v215
    %263 = vmatprep.subr.mxu0 %v220
    %264 = vmatpush1.msra.mxu0 %v219
    %265 = vmatprep.subr.mxu0 %v224
    %266 = vmatpush1.msra.mxu0 %v223
    %267 = vmatprep.subr.mxu0 %v228
    %268 = vmatpush1.msra.mxu0 %v227
    %269 = vmatprep.subr.mxu0 %v232
    %270 = vmatpush1.msra.mxu0 %v231
    %271 = vmatprep.subr.mxu0 %v236
    %272 = vmatpush1.msra.mxu0 %v235
    %273 = vmatprep.subr.mxu0 %v240
    %274 = vmatpush1.msra.mxu0 %v239
    %275 = vmatprep.subr.mxu0 0.0
    %276 = vmatpush1.msra.mxu0 0.0
    %277 = vmatprep.subr.mxu0 0.0
    %278 = vmatpush1.msra.mxu0 0.0
    %279 = vmatprep.subr.mxu0 0.0
    %280 = vmatpush1.msra.mxu0 0.0
    %281 = vmatprep.subr.mxu0 0.0
    %282 = vmatpush1.msra.mxu0 0.0
    %283 = vmatprep.subr.mxu0 0.0
    %284 = vmatpush1.msra.mxu0 0.0
    %285 = vmatprep.subr.mxu0 0.0
    %286 = vmatpush1.msra.mxu0 0.0
    %287 = vmatprep.subr.mxu0 0.0
    %288 = vmatpush1.msra.mxu0 0.0
    %289 = vmatprep.subr.mxu0 0.0
    %290 = vmatpush1.msra.mxu0 0.0
    %291 = vmatprep.subr.mxu0 0.0
    %292 = vmatpush1.msra.mxu0 0.0
    %293 = vmatprep.subr.mxu0 0.0
    %294 = vmatpush1.msra.mxu0 0.0
    %295 = vmatprep.subr.mxu0 0.0
    %296 = vmatpush1.msra.mxu0 0.0
    %297 = vmatprep.subr.mxu0 0.0
    %298 = vmatpush1.msra.mxu0 0.0
    %299 = vmatprep.subr.mxu0 0.0
    %300 = vmatpush1.msra.mxu0 0.0
    %301 = vmatprep.subr.mxu0 0.0
    %302 = vmatpush1.msra.mxu0 0.0
    %303 = vmatprep.subr.mxu0 0.0
    %304 = vmatpush1.msra.mxu0 0.0
    %305 = vmatprep.subr.mxu0 0.0
    %306 = vmatpush1.msra.mxu0 0.0
    %307 = vmatprep.mubr.f32.mxu0 0.0
    %308 = vmatmul.mubr.f32.gmra.mrb[0].mxu0 %v177
    %v309 = vpop.f32.mrb[0].mxu0
    %v310 = vadd.f32 0.0, %v309
    %v311 = vpop.f32.mrb[0].mxu0
    %v312 = vadd.f32 0.0, %v311
    %313 = vmatprep.mubr.f32.mxu0 0.0
    %314 = vmatmul.mubr.f32.gmra.mrb[0].mxu0 %v178
    %v315 = vpop.f32.mrb[0].mxu0
    %v316 = vadd.f32 0.0, %v315
    %v317 = vpop.f32.mrb[0].mxu0
    %v318 = vadd.f32 0.0, %v317
    %319 = vdwg.mxu0
    %320 = vmatprep.subr.mxu0 %v182
    %321 = vmatpush1.msra.mxu0 %v181
    %322 = vmatprep.subr.mxu0 %v186
    %323 = vmatpush1.msra.mxu0 %v185
    %324 = vmatprep.subr.mxu0 %v190
    %325 = vmatpush1.msra.mxu0 %v189
    %326 = vmatprep.subr.mxu0 %v194
    %327 = vmatpush1.msra.mxu0 %v193
    %328 = vmatprep.subr.mxu0 %v198
    %329 = vmatpush1.msra.mxu0 %v197
    %330 = vmatprep.subr.mxu0 %v202
    %331 = vmatpush1.msra.mxu0 %v201
    %332 = vmatprep.subr.mxu0 %v206
    %333 = vmatpush1.msra.mxu0 %v205
    %334 = vmatprep.subr.mxu0 %v210
    %335 = vmatpush1.msra.mxu0 %v209
    %336 = vmatprep.subr.mxu0 %v214
    %337 = vmatpush1.msra.mxu0 %v213
    %338 = vmatprep.subr.mxu0 %v218
    %339 = vmatpush1.msra.mxu0 %v217
    %340 = vmatprep.subr.mxu0 %v222
    %341 = vmatpush1.msra.mxu0 %v221
    %342 = vmatprep.subr.mxu0 %v226
    %343 = vmatpush1.msra.mxu0 %v225
    %344 = vmatprep.subr.mxu0 %v230
    %345 = vmatpush1.msra.mxu0 %v229
    %346 = vmatprep.subr.mxu0 %v234
    %347 = vmatpush1.msra.mxu0 %v233
    %348 = vmatprep.subr.mxu0 %v238
    %349 = vmatpush1.msra.mxu0 %v237
    %350 = vmatprep.subr.mxu0 %v242
    %351 = vmatpush1.msra.mxu0 %v241
    %352 = vmatprep.subr.mxu0 0.0
    %353 = vmatpush1.msra.mxu0 0.0
    %354 = vmatprep.subr.mxu0 0.0
    %355 = vmatpush1.msra.mxu0 0.0
    %356 = vmatprep.subr.mxu0 0.0
    %357 = vmatpush1.msra.mxu0 0.0
    %358 = vmatprep.subr.mxu0 0.0
    %359 = vmatpush1.msra.mxu0 0.0
    %360 = vmatprep.subr.mxu0 0.0
    %361 = vmatpush1.msra.mxu0 0.0
    %362 = vmatprep.subr.mxu0 0.0
    %363 = vmatpush1.msra.mxu0 0.0
    %364 = vmatprep.subr.mxu0 0.0
    %365 = vmatpush1.msra.mxu0 0.0
    %366 = vmatprep.subr.mxu0 0.0
    %367 = vmatpush1.msra.mxu0 0.0
    %368 = vmatprep.subr.mxu0 0.0
    %369 = vmatpush1.msra.mxu0 0.0
    %370 = vmatprep.subr.mxu0 0.0
    %371 = vmatpush1.msra.mxu0 0.0
    %372 = vmatprep.subr.mxu0 0.0
    %373 = vmatpush1.msra.mxu0 0.0
    %374 = vmatprep.subr.mxu0 0.0
    %375 = vmatpush1.msra.mxu0 0.0
    %376 = vmatprep.subr.mxu0 0.0
    %377 = vmatpush1.msra.mxu0 0.0
    %378 = vmatprep.subr.mxu0 0.0
    %379 = vmatpush1.msra.mxu0 0.0
    %380 = vmatprep.subr.mxu0 0.0
    %381 = vmatpush1.msra.mxu0 0.0
    %382 = vmatprep.subr.mxu0 0.0
    %383 = vmatpush1.msra.mxu0 0.0
    %384 = vmatprep.mubr.f32.mxu0 0.0
    %385 = vmatmul.mubr.f32.gmra.mrb[0].mxu0 %v177
    %v386 = vpop.f32.mrb[0].mxu0
    %v387 = vadd.f32 0.0, %v386
    %v388 = vpop.f32.mrb[0].mxu0
    %v389 = vadd.f32 0.0, %v388
    %390 = vmatprep.mubr.f32.mxu0 0.0
    %391 = vmatmul.mubr.f32.gmra.mrb[0].mxu0 %v178
    %v392 = vpop.f32.mrb[0].mxu0
    %v393 = vadd.f32 0.0, %v392
    %v394 = vpop.f32.mrb[0].mxu0
    %v395 = vadd.f32 0.0, %v394
    %396 = vdwg.mxu0
    %v397 = vxor.u32 %v310, 2147483648
    %v398 = vxor.u32 %v312, 2147483648
    %v399 = vxor.u32 %v316, 2147483648
    %v400 = vxor.u32 %v318, 2147483648
    %v401 = vmul.f32 %v397, 1.442695
    %v402 = vpow.pop %v401
    %v403 = vmul.f32 %v398, 1.442695
    %v404 = vpow.pop %v403
    %v405 = vmul.f32 %v399, 1.442695
    %v406 = vpow.pop %v405
    %v407 = vmul.f32 %v400, 1.442695
    %v408 = vpow.pop %v407
    %v409 = vadd.f32 %v402, 1.0
    %v410 = vadd.f32 %v404, 1.0
    %v411 = vadd.f32 %v406, 1.0
    %v412 = vadd.f32 %v408, 1.0
    %v413 = vrcp.pop %v409
    %v414 = vmul.f32 1.0, %v413
    %v415 = vrcp.pop %v410
    %v416 = vmul.f32 1.0, %v415
    %v417 = vrcp.pop %v411
    %v418 = vmul.f32 1.0, %v417
    %v419 = vrcp.pop %v412
    %v420 = vmul.f32 1.0, %v419
    %v421 = vmul.f32 %v310, %v414
    %v422 = vmul.f32 %v312, %v416
    %v423 = vmul.f32 %v316, %v418
    %v424 = vmul.f32 %v318, %v420
    %v425 = vmul.f32 %v421, %v387
    %v426 = vmul.f32 %v422, %v389
    %v427 = vmul.f32 %v423, %v393
    %v428 = vmul.f32 %v424, %v395
    %v429 = vld [vmem:[#allocation4] sm:$0xff]
    %v430 = vld [vmem:[#allocation4 + $0x8] sm:$0xff]
    %v431 = vld [vmem:[#allocation13] sm:$0xff]
    %v432 = vld [vmem:[#allocation13 + $0x8] sm:$0xff]
    %v433 = vld [vmem:[#allocation13 + $0x10] sm:$0xff]
    %v434 = vld [vmem:[#allocation13 + $0x18] sm:$0xff]
    %v435 = vld [vmem:[#allocation13 + $0x20] sm:$0xff]
    %v436 = vld [vmem:[#allocation13 + $0x28] sm:$0xff]
    %v437 = vld [vmem:[#allocation13 + $0x30] sm:$0xff]
    %v438 = vld [vmem:[#allocation13 + $0x38] sm:$0xff]
    %v439 = vld [vmem:[#allocation13 + $0x40] sm:$0xff]
    %v440 = vld [vmem:[#allocation13 + $0x48] sm:$0xff]
    %v441 = vld [vmem:[#allocation13 + $0x50] sm:$0xff]
    %v442 = vld [vmem:[#allocation13 + $0x58] sm:$0xff]
    %v443 = vld [vmem:[#allocation13 + $0x60] sm:$0xff]
    %v444 = vld [vmem:[#allocation13 + $0x68] sm:$0xff]
    %v445 = vld [vmem:[#allocation13 + $0x70] sm:$0xff]
    %v446 = vld [vmem:[#allocation13 + $0x78] sm:$0xff]
    %v447 = vld [vmem:[#allocation13 + $0x80] sm:$0xff]
    %v448 = vld [vmem:[#allocation13 + $0x88] sm:$0xff]
    %v449 = vld [vmem:[#allocation13 + $0x90] sm:$0xff]
    %v450 = vld [vmem:[#allocation13 + $0x98] sm:$0xff]
    %v451 = vld [vmem:[#allocation13 + $0xa0] sm:$0xff]
    %v452 = vld [vmem:[#allocation13 + $0xa8] sm:$0xff]
    %v453 = vld [vmem:[#allocation13 + $0xb0] sm:$0xff]
    %v454 = vld [vmem:[#allocation13 + $0xb8] sm:$0xff]
    %v455 = vld [vmem:[#allocation13 + $0xc0] sm:$0xff]
    %v456 = vld [vmem:[#allocation13 + $0xc8] sm:$0xff]
    %v457 = vld [vmem:[#allocation13 + $0xd0] sm:$0xff]
    %v458 = vld [vmem:[#allocation13 + $0xd8] sm:$0xff]
    %v459 = vld [vmem:[#allocation13 + $0xe0] sm:$0xff]
    %v460 = vld [vmem:[#allocation13 + $0xe8] sm:$0xff]
    %v461 = vld [vmem:[#allocation13 + $0xf0] sm:$0xff]
    %v462 = vld [vmem:[#allocation13 + $0xf8] sm:$0xff]
    %463 = vmatprep.subr.mxu0 0.0
    %464 = vmatpush1.msra.mxu0 %v431
    %465 = vmatprep.subr.mxu0 0.0
    %466 = vmatpush1.msra.mxu0 %v432
    %467 = vmatprep.subr.mxu0 0.0
    %468 = vmatpush1.msra.mxu0 %v433
    %469 = vmatprep.subr.mxu0 0.0
    %470 = vmatpush1.msra.mxu0 %v434
    %471 = vmatprep.subr.mxu0 0.0
    %472 = vmatpush1.msra.mxu0 %v435
    %473 = vmatprep.subr.mxu0 0.0
    %474 = vmatpush1.msra.mxu0 %v436
    %475 = vmatprep.subr.mxu0 0.0
    %476 = vmatpush1.msra.mxu0 %v437
    %477 = vmatprep.subr.mxu0 0.0
    %478 = vmatpush1.msra.mxu0 %v438
    %479 = vmatprep.subr.mxu0 0.0
    %480 = vmatpush1.msra.mxu0 %v439
    %481 = vmatprep.subr.mxu0 0.0
    %482 = vmatpush1.msra.mxu0 %v440
    %483 = vmatprep.subr.mxu0 0.0
    %484 = vmatpush1.msra.mxu0 %v441
    %485 = vmatprep.subr.mxu0 0.0
    %486 = vmatpush1.msra.mxu0 %v442
    %487 = vmatprep.subr.mxu0 0.0
    %488 = vmatpush1.msra.mxu0 %v443
    %489 = vmatprep.subr.mxu0 0.0
    %490 = vmatpush1.msra.mxu0 %v444
    %491 = vmatprep.subr.mxu0 0.0
    %492 = vmatpush1.msra.mxu0 %v445
    %493 = vmatprep.subr.mxu0 0.0
    %494 = vmatpush1.msra.mxu0 %v446
    %495 = vmatprep.subr.mxu0 0.0
    %496 = vmatpush1.msra.mxu0 %v447
    %497 = vmatprep.subr.mxu0 0.0
    %498 = vmatpush1.msra.mxu0 %v448
    %499 = vmatprep.subr.mxu0 0.0
    %500 = vmatpush1.msra.mxu0 %v449
    %501 = vmatprep.subr.mxu0 0.0
    %502 = vmatpush1.msra.mxu0 %v450
    %503 = vmatprep.subr.mxu0 0.0
    %504 = vmatpush1.msra.mxu0 %v451
    %505 = vmatprep.subr.mxu0 0.0
    %506 = vmatpush1.msra.mxu0 %v452
    %507 = vmatprep.subr.mxu0 0.0
    %508 = vmatpush1.msra.mxu0 %v453
    %509 = vmatprep.subr.mxu0 0.0
    %510 = vmatpush1.msra.mxu0 %v454
    %511 = vmatprep.subr.mxu0 0.0
    %512 = vmatpush1.msra.mxu0 %v455
    %513 = vmatprep.subr.mxu0 0.0
    %514 = vmatpush1.msra.mxu0 %v456
    %515 = vmatprep.subr.mxu0 0.0
    %516 = vmatpush1.msra.mxu0 %v457
    %517 = vmatprep.subr.mxu0 0.0
    %518 = vmatpush1.msra.mxu0 %v458
    %519 = vmatprep.subr.mxu0 0.0
    %520 = vmatpush1.msra.mxu0 %v459
    %521 = vmatprep.subr.mxu0 0.0
    %522 = vmatpush1.msra.mxu0 %v460
    %523 = vmatprep.subr.mxu0 0.0
    %524 = vmatpush1.msra.mxu0 %v461
    %525 = vmatprep.subr.mxu0 0.0
    %526 = vmatpush1.msra.mxu0 %v462
    %527 = vmatprep.mubr.f32.mxu0 %v426
    %528 = vmatmul.mubr.f32.gmra.mrb[0].mxu0 %v425
    %v529 = vpop.f32.mrb[0].mxu0
    %v530 = vadd.f32 0.0, %v529
    %v531 = vpop.f32.mrb[0].mxu0
    %532 = vmatprep.mubr.f32.mxu0 %v428
    %533 = vmatmul.mubr.f32.gmra.mrb[0].mxu0 %v427
    %v534 = vpop.f32.mrb[0].mxu0
    %v535 = vadd.f32 0.0, %v534
    %v536 = vpop.f32.mrb[0].mxu0
    %537 = vdwg.mxu0
    %v538 = vadd.f32 %v429, %v530
    %v539 = vadd.f32 %v430, %v535
    %540 = vst [vmem:[#allocation4] sm:$0xff] %v538
    %541 = vst [vmem:[#allocation4 + $0x8] sm:$0xff] %v539
    // Predicated region
    $region75: #{tpu_custom_call.1} parent=1 // pred_check
      %p542 = pneg %p60
    $region76: #{tpu_custom_call.1} parent=1 // pred_check_branch
      %544 = sbr.rel (%p542) target = $region78
    $region77: #{tpu_custom_call.1} parent=1 // pred_region
      %v545 = vld [vmem:[#allocation2] sm:$0xff]
      %v546 = vld [vmem:[#allocation2 + $0x8] sm:$0xff]
      %v547 = vld [vmem:[#allocation4] sm:$0xff]
      %v548 = vld [vmem:[#allocation4 + $0x8] sm:$0xff]
      %v549 = vadd.f32 %v545, %v547
      %v550 = vadd.f32 %v546, %v548
      %551 = vst [vmem:[#allocation15] sm:$0xff] %v549
      %552 = vst [vmem:[#allocation15 + $0x8] sm:$0xff] %v550
    $region78: #{tpu_custom_call.1} parent=1 // pred_fallthru
      _
    // Predicated region
    $region79: #{tpu_custom_call.1} parent=1 // pred_check
      _
    $region80: #{tpu_custom_call.1} parent=1 // pred_check_branch
      %554 = sbr.rel (0) target = $region82
    $region81: #{tpu_custom_call.1} parent=1 // pred_region
      %s556 = ssub.s32 256, 256
      %557 = vsyncadd [#allocation12], %s556
      %s558 = sshll.u32 [#allocation15], 4
      %s559 = int_to_ptr.vmem [resolvable:$true] %s558
      %564 = dma.vmem_to_hbm [thread:$0]  %s559, 256, %s8, [#allocation12], 128, 128, 8
    $region82: #{tpu_custom_call.1} parent=1 // pred_fallthru
      _
    // Predicated region
    $region83: #{tpu_custom_call.1} parent=1 // pred_check
      _
    $region84: #{tpu_custom_call.1} parent=1 // pred_check_branch
      %566 = sbr.rel (0) target = $region86
    $region85: #{tpu_custom_call.1} parent=1 // pred_region
      %567 = dma.done [#allocation12], 256
    $region86: #{tpu_custom_call.1} parent=1 // pred_fallthru
      _
    %568 = vsyncpa [#allocation11], 1
    %569 = vsyncpa [#allocation14], 1
    %570 = vsyncpa [#allocation12], 1
  %571 = vsyncmov [#allocation5]
  %s572 = vpop.sfrf %571
  %p573 = scmp.eq.s32.totalorder %s572, 0
  %p574 = pneg %p573
  %576 = shalt.err (%p574)

</llo_original>
